<compile_context>
chip_gen: v5e
topology: v5e:2x2
jax: 0.10.0
libtpu: 0.0.40
codegen_flags: <defaults>
</compile_context>

<pallas_src>
import jax
import jax.numpy as jnp
from jax import lax
from jax.experimental import pallas as pl
from jax.experimental.pallas import tpu as pltpu

_BIG = 1e30                       # hinge sentinel for padded rows/cols
_VMEM_LIMIT = 32 * 1024 * 1024    # safe scoped-VMEM limit on v5e/v6e/v7x

_TM_CAP = 2048                    # sublane (negatives) tile cap, pow2 multiple of 8
_TN_CAP = 2048                    # lane (positives) tile cap, pow2 multiple of 128


def _round_up(x, m):
    return (x + m - 1) // m * m


def _pick_tile(dim, unit, cap):
    """Largest power-of-two multiple of `unit` <= cap, doubling from `unit`
    only while still below `dim` (so tiny problems get tiny tiles)."""
    t = unit
    while t < dim and t * 2 <= cap:
        t *= 2
    return t


# -------------------- fused pairwise hinge + reduction ----------------------
def _hinge_kernel(wp_ref, nm_ref, out_ref):
    # wp_ref : [1, TN]   lane-dense weighted-positive scores (stride-0 sublane
    #                    broadcast; no in-kernel transpose).
    # nm_ref : [TM, 1]   per-negative max scores for this M-tile.
    # out_ref: [8, TN]   lane-dense accumulator, resident across the ni axis
    #                    (same output block index for every ni -> one HBM
    #                    writeback per M-tile).
    ni = pl.program_id(1)

    @pl.when(ni == 0)
    def _():
        out_ref[...] = jnp.zeros_like(out_ref)

    tm = nm_ref.shape[0]
    tn = wp_ref.shape[1]
    one_minus_wp = 1.0 - wp_ref[...]                       # [1, TN], hoisted

    n_chunks = tm // 8                                     # static python int

    def body(c, acc):
        off = pl.multiple_of(c * 8, 8)
        nm_chunk = nm_ref[pl.ds(off, 8), :]                # [8, 1]
        d = jnp.maximum(one_minus_wp + nm_chunk, 0.0)      # [8, TN], pure VPU
        return acc + d

    acc = lax.fori_loop(0, n_chunks, body,
                        jnp.zeros((8, tn), jnp.float32),
                        unroll=min(n_chunks, 4))
    out_ref[...] += acc


def custom_loss_min_max(pos_outputs, neg_outputs, p):
    """Pallas TPU forward of CustomLossMinMax.

    pos_outputs: [N, C], p: [N, C] (detached weights), neg_outputs: [M, C2].
    Returns a scalar float32 loss.
    """
    n, c = pos_outputs.shape
    m, c2 = neg_outputs.shape

    # ---- stage 1 (tiny, C ~ 10): weighted-positive score and negative max
    # computed in plain XLA per the perf review (launch overhead dominates a
    # dedicated kernel at these sizes).
    wp = jnp.sum(pos_outputs.astype(jnp.float32) * p.astype(jnp.float32), axis=1)  # [N]
    nm = jnp.max(neg_outputs.astype(jnp.float32), axis=1)                          # [M]

    # ---- tiling for the O(M*N) hinge stage ----
    tn = _pick_tile(n, 128, _TN_CAP)          # lane tile (multiple of 128)
    tm = _pick_tile(m, 8, _TM_CAP)            # sublane tile (pow2 multiple of 8)
    n_pad = _round_up(n, tn)
    m_pad = _round_up(m, tm)
    # v7x megacore: keep >= 2 tiles along the "parallel" M axis when possible.
    while m_pad // tm < 2 and tm > 8:
        tm //= 2
        m_pad = _round_up(m, tm)

    n_mt = m_pad // tm
    n_nt = n_pad // tn

    # Layout plumbing only: lane-dense wp row + nm column, padded with
    # sentinels so padded entries contribute exactly 0 to the hinge sum.
    wp_row = jnp.full((1, n_pad), _BIG, jnp.float32).at[0, :n].set(wp)
    nm_col = jnp.full((m_pad, 1), -_BIG, jnp.float32).at[:m, 0].set(nm)

    partials = pl.pallas_call(
        _hinge_kernel,
        out_shape=jax.ShapeDtypeStruct((n_mt * 8, tn), jnp.float32),
        grid=(n_mt, n_nt),
        in_specs=[
            pl.BlockSpec((1, tn), lambda mi, ni: (0, ni)),
            pl.BlockSpec((tm, 1), lambda mi, ni: (mi, 0)),
        ],
        out_specs=pl.BlockSpec((8, tn), lambda mi, ni: (mi, 0)),
        compiler_params=pltpu.CompilerParams(
            dimension_semantics=("parallel", "arbitrary"),
            vmem_limit_bytes=_VMEM_LIMIT,
        ),
    )(wp_row, nm_col)

    return jnp.sum(partials) / jnp.float32(m * n)


def _reference(pos_outputs, neg_outputs, p):
    wp = jnp.sum(pos_outputs * p, axis=1)          # [N]
    nm = jnp.max(neg_outputs, axis=1)              # [M]
    d = jnp.maximum(1.0 - wp[None, :] + nm[:, None], 0.0)
    return jnp.sum(d) / (neg_outputs.shape[0] * pos_outputs.shape[0])


if __name__ == "__main__":
    key = jax.random.PRNGKey(0)
    k1, k2, k3, k4, k5, k6 = jax.random.split(key, 6)

    loss_fn = jax.jit(custom_loss_min_max)

    # Small CIFAR10-like shapes: N positives, M negatives, C=10 classes.
    N, M, C = 8, 16, 10
    pos = jax.random.normal(k1, (N, C), dtype=jnp.float32)
    neg = jax.random.normal(k2, (M, C), dtype=jnp.float32)
    pw = jax.nn.softmax(jax.random.normal(k3, (N, C), dtype=jnp.float32), axis=1)
    out = jax.block_until_ready(loss_fn(pos, neg, pw))
    ref = jax.block_until_ready(_reference(pos, neg, pw))
    assert jnp.allclose(out, ref, rtol=1e-5, atol=1e-5), (out, ref)

    # Larger shapes exercising padding, the multi-tile grid, and the chunked
    # in-kernel accumulation path.
    N2, M2, C2 = 1000, 600, 10
    pos2 = jax.random.normal(k4, (N2, C2), dtype=jnp.float32)
    neg2 = jax.random.normal(k5, (M2, C2), dtype=jnp.float32)
    pw2 = jax.nn.softmax(jax.random.normal(k6, (N2, C2), dtype=jnp.float32), axis=1)
    out2 = jax.block_until_ready(loss_fn(pos2, neg2, pw2))
    ref2 = jax.block_until_ready(_reference(pos2, neg2, pw2))
    assert jnp.allclose(out2, ref2, rtol=1e-4, atol=1e-4), (out2, ref2)

    print("KERNEL_OK")
</pallas_src>

<mosaic_0001>
module attributes {stable_mosaic.version = 11 : i64} {
  func.func @_hinge_kernel(%arg0: i32, %arg1: i32, %arg2: memref<1x128xf32, #tpu.memory_space<vmem>>, %arg3: memref<8x1xf32, #tpu.memory_space<vmem>>, %arg4: memref<8x128xf32, #tpu.memory_space<vmem>>) attributes {dimension_semantics = [#tpu.dimension_semantics<parallel>, #tpu.dimension_semantics<arbitrary>], iteration_bounds = array<i64: 2, 1>, scalar_prefetch = 0 : i64, scratch_operands = 0 : i64, tpu.core_type = #tpu.core_type<tc>, window_params = [{transform_indices = @transform_0, window_bounds = array<i64: 1, 128>}, {transform_indices = @transform_1, window_bounds = array<i64: 8, 1>}, {transform_indices = @transform_2, window_bounds = array<i64: 8, 128>}]} {
    %c0_i32 = arith.constant 0 : i32
    %0 = arith.cmpi eq, %arg1, %c0_i32 : i32
    %1 = arith.extui %0 : i1 to i32
    %c0_i32_0 = arith.constant 0 : i32
    %2 = arith.cmpi ne, %1, %c0_i32_0 : i32
    scf.if %2 {
      %cst_10 = arith.constant 0.000000e+00 : f32
      %20 = vector.broadcast %cst_10 : f32 to vector<8x128xf32>
      %c0_11 = arith.constant 0 : index
      %c0_12 = arith.constant 0 : index
      %21 = vector.load %arg4[%c0_11, %c0_12] : memref<8x128xf32, #tpu.memory_space<vmem>>, vector<8x128xf32>
      tpu.vector_store %arg4[%c0_11, %c0_12], %20 {strides = array<i32>} : memref<8x128xf32, #tpu.memory_space<vmem>>, vector<8x128xf32>,
    } else {
    }
    %c0 = arith.constant 0 : index
    %c0_1 = arith.constant 0 : index
    %3 = vector.load %arg2[%c0, %c0_1] : memref<1x128xf32, #tpu.memory_space<vmem>>, vector<1x128xf32>
    %cst = arith.constant 1.000000e+00 : f32
    %4 = vector.broadcast %cst : f32 to vector<1x128xf32>
    %5 = arith.subf %4, %3 : vector<1x128xf32>
    %cst_2 = arith.constant 0.000000e+00 : f32
    %6 = vector.broadcast %cst_2 : f32 to vector<8x128xf32>
    %c0_i32_3 = arith.constant 0 : i32
    %c8_i32 = arith.constant 8 : i32
    %7 = arith.muli %c0_i32_3, %c8_i32 : i32
    %8 = tpu.assume_multiple %7, 8 : i32
    %9 = arith.index_cast %8 : i32 to index
    %c0_4 = arith.constant 0 : index
    %10 = vector.load %arg3[%9, %c0_4] : memref<8x1xf32, #tpu.memory_space<vmem>>, vector<8x1xf32>
    %11 = vector.broadcast %5 : vector<1x128xf32> to vector<8x128xf32>
    %12 = vector.broadcast %10 : vector<8x1xf32> to vector<8x128xf32>
    %13 = arith.addf %11, %12 : vector<8x128xf32>
    %cst_5 = arith.constant 0.000000e+00 : f32
    %14 = vector.broadcast %cst_5 : f32 to vector<8x128xf32>
    %15 = arith.maximumf %13, %14 : vector<8x128xf32>
    %16 = arith.addf %6, %15 : vector<8x128xf32>
    %c1_i32 = arith.constant 1 : i32
    %c0_6 = arith.constant 0 : index
    %c0_7 = arith.constant 0 : index
    %17 = vector.load %arg4[%c0_6, %c0_7] : memref<8x128xf32, #tpu.memory_space<vmem>>, vector<8x128xf32>
    %18 = arith.addf %17, %16 : vector<8x128xf32>
    %c0_8 = arith.constant 0 : index
    %c0_9 = arith.constant 0 : index
    %19 = vector.load %arg4[%c0_8, %c0_9] : memref<8x128xf32, #tpu.memory_space<vmem>>, vector<8x128xf32>
    tpu.vector_store %arg4[%c0_8, %c0_9], %18 {strides = array<i32>} : memref<8x128xf32, #tpu.memory_space<vmem>>, vector<8x128xf32>,
    return
  }
  func.func @transform_0(%arg0: i32, %arg1: i32) -> (i32, i32) {
    %c0_i32 = arith.constant 0 : i32
    %c0_i32_0 = arith.constant 0 : i32
    return %c0_i32, %arg1 : i32, i32
  }
  func.func @transform_1(%arg0: i32, %arg1: i32) -> (i32, i32) {
    %c0_i32 = arith.constant 0 : i32
    %c0_i32_0 = arith.constant 0 : i32
    return %arg0, %c0_i32 : i32, i32
  }
  func.func @transform_2(%arg0: i32, %arg1: i32) -> (i32, i32) {
    %c0_i32 = arith.constant 0 : i32
    %c0_i32_0 = arith.constant 0 : i32
    return %arg0, %c0_i32 : i32, i32
  }
}

</mosaic_0001>

<llo_original>
// kernel: custom_loss_min_max.1
$region0: #{custom_loss_min_max.1}
  #allocation0 [shape = 'u32[]', space=smem, size = 0x4, offset = 0x4, fixed_abs, tag = 'smem constant byte address 0x4 - core index']
  #allocation1 [shape = 'u32[72,128]{1,0:T(1,128)}', space=vmem, size = 0x9000, scoped, tag = 'internal scratch']
  %s0 = inlined_call_operand.vmem [shape: f32[1,128], index: 0, kind: input, shape index: {}]
  %s1 = inlined_call_operand.vmem [shape: f32[16,1], index: 1, kind: input, shape index: {}]
  %s2 = inlined_call_operand.vmem [shape: f32[16,128], index: 2, kind: output, shape index: {}]
  %s3 = sld [smem:[#allocation0]]
  $region45: #{custom_loss_min_max.1} parent=0
    _
  %s5 = ssub.s32 1, %s3
  %s6 = scalar_select 0, %s5, %s3
  loop: start=0, step=1, limit=4
  $region2: #{custom_loss_min_max.1} parent=0 // loop_pre_header
    _
  $region3: #{custom_loss_min_max.1} parent=0 // loop_header
    %s8 = sphi 0, %s12
    %p9 = scmp.ge.s32.totalorder %s8, 4
    %s15 = sphi 0, %s27
    %s16 = sphi 0, %s23
    %s17 = sphi 0, %s15
    %s18 = sphi 0, %s16
    %s19 = sphi 0, %s17
    %s20 = sphi 0, %s18
    %s30 = sphi 0, %s32
    %s33 = sphi 0, %s30
    %s34 = sphi 0, %s33
    %s50 = sphi 0, %s34
    %s56 = sphi 0, %s58
    %s59 = sphi 0, %s56
    %s60 = sphi 0, %s59
    %s76 = sphi 0, %s60
    %s82 = sphi 0, %s84
    %s85 = sphi 0, %s82
    %s86 = sphi 0, %s85
    %s102 = sphi 0, %s86
  $region4: #{custom_loss_min_max.1} parent=0 // loop_header_branch
    %11 = sbr.rel (%p9) target = $region8
  $region5: #{custom_loss_min_max.1} parent=0 // loop_body
    %s13 = ssub.s32 %s8, 1
    %s14 = ssub.s32 %s8, 2
    %s21 = sadd.s32 1, %s16
    %p22 = scmp.ge.s32.totalorder %s21, 1
    %s23 = scalar_select %p22, 0, %s21
    %s24 = sadd.s32 1, %s15
    %s25 = scalar_select %p22, %s24, %s15
    %p26 = scmp.ge.s32.totalorder %s25, 2
    %s27 = scalar_select %p26, 0, %s25
    %s28 = ssub.s32 %s16, %s23
    %p29 = scmp.eq.s32.totalorder %s28, 0
    %s31 = sadd.s32 %s30, 1
    %s32 = scalar_select %p29, %s30, %s31
    %p35 = pneg %p29
    %p36 = scmp.eq.s32.totalorder %s8, 1
    %p37 = por %p35, %p36
    %p38 = scmp.ne.s32.totalorder %s30, %s33
    %p39 = scmp.eq.s32.totalorder %s8, 0
    %p40 = por %p38, %p39
    %p41 = scmp.ne.s32.totalorder %s30, %s33
    %p42 = scmp.eq.s32.totalorder %s13, 1
    %p43 = por %p41, %p42
    %p44 = scmp.ne.s32.totalorder %s33, %s34
    %p45 = scmp.eq.s32.totalorder %s13, 0
    %p46 = por %p44, %p45
    %p47 = scmp.ne.s32.totalorder %s33, %s34
    %p48 = scmp.eq.s32.totalorder %s14, 1
    %p49 = por %p47, %p48
    %p51 = scmp.ne.s32.totalorder %s34, %s50
    %p52 = scmp.eq.s32.totalorder %s14, 0
    %p53 = por %p51, %p52
    %s54 = ssub.s32 %s15, %s27
    %p55 = scmp.eq.s32.totalorder %s54, 0
    %s57 = sadd.s32 %s56, 1
    %s58 = scalar_select %p55, %s56, %s57
    %p61 = pneg %p55
    %p62 = scmp.eq.s32.totalorder %s8, 1
    %p63 = por %p61, %p62
    %p64 = scmp.ne.s32.totalorder %s56, %s59
    %p65 = scmp.eq.s32.totalorder %s8, 0
    %p66 = por %p64, %p65
    %p67 = scmp.ne.s32.totalorder %s56, %s59
    %p68 = scmp.eq.s32.totalorder %s13, 1
    %p69 = por %p67, %p68
    %p70 = scmp.ne.s32.totalorder %s59, %s60
    %p71 = scmp.eq.s32.totalorder %s13, 0
    %p72 = por %p70, %p71
    %p73 = scmp.ne.s32.totalorder %s59, %s60
    %p74 = scmp.eq.s32.totalorder %s14, 1
    %p75 = por %p73, %p74
    %p77 = scmp.ne.s32.totalorder %s60, %s76
    %p78 = scmp.eq.s32.totalorder %s14, 0
    %p79 = por %p77, %p78
    %s80 = ssub.s32 %s15, %s27
    %p81 = scmp.eq.s32.totalorder %s80, 0
    %s83 = sadd.s32 %s82, 1
    %s84 = scalar_select %p81, %s82, %s83
    %p87 = pneg %p81
    %p88 = scmp.eq.s32.totalorder %s8, 1
    %p89 = por %p87, %p88
    %p90 = scmp.ne.s32.totalorder %s82, %s85
    %p91 = scmp.eq.s32.totalorder %s8, 0
    %p92 = por %p90, %p91
    %p93 = scmp.ne.s32.totalorder %s82, %s85
    %p94 = scmp.eq.s32.totalorder %s13, 1
    %p95 = por %p93, %p94
    %p96 = scmp.ne.s32.totalorder %s85, %s86
    %p97 = scmp.eq.s32.totalorder %s13, 0
    %p98 = por %p96, %p97
    %p99 = scmp.ne.s32.totalorder %s85, %s86
    %p100 = scmp.eq.s32.totalorder %s14, 1
    %p101 = por %p99, %p100
    %p103 = scmp.ne.s32.totalorder %s86, %s102
    %p104 = scmp.eq.s32.totalorder %s14, 0
    %p105 = por %p103, %p104
    %p106 = scmp.le.s32.totalorder 1, %s8
    %p107 = scmp.lt.s32.totalorder %s8, 3
    %p108 = pnand %p106, %p107
    %p109 = pneg %p108
    // Predicated region
    $region9: #{custom_loss_min_max.1} parent=5 // pred_check
      _
    $region10: #{custom_loss_min_max.1} parent=5 // pred_check_branch
      %111 = sbr.rel (%p108) target = $region12
    $region11: #{custom_loss_min_max.1} parent=5 // pred_region
      %s112 = ssub.s32 %s8, 1
      // Predicated region
      $region13: #{custom_loss_min_max.1} parent=11 // pred_check
        %p113 = pneg %p46
      $region14: #{custom_loss_min_max.1} parent=11 // pred_check_branch
        %115 = sbr.rel (%p113) target = $region16
      $region15: #{custom_loss_min_max.1} parent=11 // pred_region
        %p116 = scmp.lt.s32.totalorder %s18, 0
        %s117 = scalar_select %p116, %s18, 0
        %s118 = scalar_lea.vmem %s0, %s117
      $region16: #{custom_loss_min_max.1} parent=11 // pred_fallthru
        _
    $region12: #{custom_loss_min_max.1} parent=5 // pred_fallthru
      _
    %p119 = scmp.lt.s32.totalorder %s8, 2
    // Predicated region
    $region17: #{custom_loss_min_max.1} parent=5 // pred_check
      %p120 = pneg %p119
    $region18: #{custom_loss_min_max.1} parent=5 // pred_check_branch
      %122 = sbr.rel (%p120) target = $region20
    $region19: #{custom_loss_min_max.1} parent=5 // pred_region
      // Predicated region
      $region21: #{custom_loss_min_max.1} parent=19 // pred_check
        %p123 = pneg %p66
      $region22: #{custom_loss_min_max.1} parent=19 // pred_check_branch
        %125 = sbr.rel (%p123) target = $region24
      $region23: #{custom_loss_min_max.1} parent=19 // pred_region
        %p126 = scmp.lt.s32.totalorder %s15, 1
        %s127 = scalar_select %p126, %s15, 1
        %s128 = smul.addr %s127, 8
        %s129 = scalar_lea.vmem %s1, %s128
      $region24: #{custom_loss_min_max.1} parent=19 // pred_fallthru
        _
    $region20: #{custom_loss_min_max.1} parent=5 // pred_fallthru
      _
    %p130 = scmp.le.s32.totalorder 1, %s8
    %p131 = scmp.lt.s32.totalorder %s8, 3
    %p132 = pnand %p130, %p131
    %p133 = pneg %p132
    // Predicated region
    $region25: #{custom_loss_min_max.1} parent=5 // pred_check
      _
    $region26: #{custom_loss_min_max.1} parent=5 // pred_check_branch
      %135 = sbr.rel (%p132) target = $region28
    $region27: #{custom_loss_min_max.1} parent=5 // pred_region
      %s136 = ssub.s32 %s8, 1
      %p137 = scmp.lt.s32.totalorder %s18, 0
      %s138 = scalar_select %p137, %s18, 0
      %s139 = scalar_lea.vmem %s0, %s138
      %p140 = pneg %p46
      %p141 = pneg %p43
      %p142 = scmp.lt.s32.totalorder %s17, 1
      %s143 = scalar_select %p142, %s17, 1
      %s144 = smul.addr %s143, 8
      %s145 = scalar_lea.vmem %s1, %s144
      %p146 = pneg %p72
      %p147 = pneg %p69
      %p148 = pneg %p98
      %p149 = pneg %p95
      %p150 = scmp.lt.s32.totalorder %s17, 1
      %s151 = scalar_select %p150, %s17, 1
      %s152 = smul.addr %s151, 8
      %s153 = scalar_lea.vmem %s2, %s152
      %p154 = scmp.lt.s32.totalorder %s18, 0
      %s155 = scalar_select %p154, %s18, 0
      %s156 = scalar_lea.vmem %s0, %s155
      %p157 = scmp.lt.s32.totalorder %s17, 1
      %s158 = scalar_select %p157, %s17, 1
      %s159 = smul.addr %s158, 8
      %s160 = scalar_lea.vmem %s1, %s159
      %p161 = scmp.lt.s32.totalorder %s17, 1
      %s162 = scalar_select %p161, %s17, 1
      %s163 = smul.addr %s162, 8
      %s164 = scalar_lea.vmem %s2, %s163
      %p165 = scmp.eq.s32.totalorder %s18, 0
      // Predicated region
      $region29: #{custom_loss_min_max.1} parent=27 // pred_check
        %p166 = pneg %p165
      $region30: #{custom_loss_min_max.1} parent=27 // pred_check_branch
        %168 = sbr.rel (%p166) target = $region32
      $region31: #{custom_loss_min_max.1} parent=27 // pred_region
        %169 = vst [vmem:[%s164] sm:$0xff] 0.0
      $region32: #{custom_loss_min_max.1} parent=27 // pred_fallthru
        _
      %v170 = vld [vmem:[%s156] sm:$0x1]
      %v171 = vsub.f32 1.0, %v170
      %v172 = vld [vmem:[%s160] sm:$0xff]
      %v174 = vperm.slane %v171, 0
      %177 = vset.pattern.permute.xlu0 0
      %178 = vperm.xlu0 %177, %v172
      %v179 = vpop.permute.xlu0 %178
      %v181 = vadd.f32 %v174, %v179
      %v182 = vmax.f32 %v181, 0.0
      %v183 = vadd.f32 %v182, 0.0
      %v184 = vld [vmem:[%s164] sm:$0xff]
      %v185 = vadd.f32 %v184, %v183
      %186 = vst [vmem:[%s164] sm:$0xff] %v185
      %p187 = scmp.lt.s32.totalorder %s17, 1
      %s188 = scalar_select %p187, %s17, 1
      %s189 = smul.addr %s188, 8
      %s190 = scalar_lea.vmem %s2, %s189
      // Predicated region
      $region33: #{custom_loss_min_max.1} parent=27 // pred_check
        %p191 = pneg %p95
      $region34: #{custom_loss_min_max.1} parent=27 // pred_check_branch
        %193 = sbr.rel (%p191) target = $region36
      $region35: #{custom_loss_min_max.1} parent=27 // pred_region
        _
      $region36: #{custom_loss_min_max.1} parent=27 // pred_fallthru
        _
    $region28: #{custom_loss_min_max.1} parent=5 // pred_fallthru
      _
    %p194 = scmp.le.s32.totalorder 2, %s8
    // Predicated region
    $region37: #{custom_loss_min_max.1} parent=5 // pred_check
      %p195 = pneg %p194
    $region38: #{custom_loss_min_max.1} parent=5 // pred_check_branch
      %197 = sbr.rel (%p195) target = $region40
    $region39: #{custom_loss_min_max.1} parent=5 // pred_region
      %s198 = ssub.s32 %s8, 2
      // Predicated region
      $region41: #{custom_loss_min_max.1} parent=39 // pred_check
        %p199 = pneg %p101
      $region42: #{custom_loss_min_max.1} parent=39 // pred_check_branch
        %201 = sbr.rel (%p199) target = $region44
      $region43: #{custom_loss_min_max.1} parent=39 // pred_region
        %p202 = scmp.lt.s32.totalorder %s19, 1
        %s203 = scalar_select %p202, %s19, 1
        %s204 = smul.addr %s203, 8
        %s205 = scalar_lea.vmem %s2, %s204
      $region44: #{custom_loss_min_max.1} parent=39 // pred_fallthru
        _
    $region40: #{custom_loss_min_max.1} parent=5 // pred_fallthru
      _
  $region6: #{custom_loss_min_max.1} parent=0 // loop_footer
    %s12 = sadd.s32 1, %s8
  $region7: #{custom_loss_min_max.1} parent=0 // loop_footer_branch
    %7 = sbr.rel target = $region3
  $region8: #{custom_loss_min_max.1} parent=0 // loop_exit
    _

</llo_original>
